<compile_context>
chip_gen: v7x
topology: tpu7x:2x2x1
jax: 0.10.0
libtpu: 0.0.40
codegen_flags: <defaults>
</compile_context>

<pallas_src>
import jax
import jax.numpy as jnp
from jax.experimental import pallas as pl
from jax.experimental.pallas import tpu as pltpu  # noqa: F401  (TPU backend)


def mydense_kernel(x_ref, w_ref, o_ref):
    # x_ref: (B, 4), w_ref: (1, 4) -- folded weight chain, pre-transposed.
    # VPU broadcast-multiply + single XLU reduce; no MXU at K=4, N=1.
    o_ref[...] = jnp.sum(x_ref[...] * w_ref[...], axis=-1, keepdims=True)


def mydense_forward(x, weights):
    # Fold W0 @ W1 @ W2 @ W3 -> (4, 1) once in the wrapper (tiny XLA matmuls),
    # then transpose to (1, 4) so the kernel can broadcast it row-wise.
    # Note: folding changes FP association order slightly (well within 1e-5).
    w = weights[0]
    for wi in weights[1:]:
        w = w @ wi
    w_row = w.T  # (1, 4)

    B = x.shape[0]
    out_shape = jax.ShapeDtypeStruct((B, weights[-1].shape[1]), x.dtype)

    full = lambda a: pl.BlockSpec(a.shape, lambda: (0,) * a.ndim)

    return pl.pallas_call(
        mydense_kernel,
        out_shape=out_shape,
        in_specs=[full(x), full(w_row)],
        out_specs=pl.BlockSpec(out_shape.shape, lambda: (0, 0)),
    )(x, w_row)


if __name__ == "__main__":
    key = jax.random.PRNGKey(0)
    kx, k0, k1, k2, k3 = jax.random.split(key, 5)

    # torch.rand(2, 4) -> uniform [0, 1)
    x = jax.random.uniform(kx, (2, 4), dtype=jnp.float32)

    # nn.Parameter(torch.randn(...)) -> standard normal, deterministic here
    weights = [
        jax.random.normal(k0, (4, 4), dtype=jnp.float32),
        jax.random.normal(k1, (4, 4), dtype=jnp.float32),
        jax.random.normal(k2, (4, 4), dtype=jnp.float32),
        jax.random.normal(k3, (4, 1), dtype=jnp.float32),
    ]

    out = mydense_forward(x, weights)
    jax.block_until_ready(out)

    # Pure-JAX reference of the original chained-matmul semantics.
    ref = x
    for w in weights:
        ref = ref @ w
    assert out.shape == (2, 1)
    assert jnp.allclose(out, ref, atol=1e-5, rtol=1e-5)

    print("KERNEL_OK")
</pallas_src>

<mosaic_0001>
module attributes {stable_mosaic.version = 11 : i64} {
  func.func @mydense_kernel(%arg0: memref<2x4xf32, #tpu.memory_space<vmem>>, %arg1: memref<1x4xf32, #tpu.memory_space<vmem>>, %arg2: memref<2x1xf32, #tpu.memory_space<vmem>>) attributes {dimension_semantics = [], scalar_prefetch = 0 : i64, scratch_operands = 0 : i64, tpu.core_type = #tpu.core_type<tc>} {
    %c0 = arith.constant 0 : index
    %c0_0 = arith.constant 0 : index
    %0 = vector.load %arg0[%c0, %c0_0] : memref<2x4xf32, #tpu.memory_space<vmem>>, vector<2x4xf32>
    %c0_1 = arith.constant 0 : index
    %c0_2 = arith.constant 0 : index
    %1 = vector.load %arg1[%c0_1, %c0_2] : memref<1x4xf32, #tpu.memory_space<vmem>>, vector<1x4xf32>
    %2 = vector.broadcast %1 : vector<1x4xf32> to vector<2x4xf32>
    %3 = arith.mulf %0, %2 : vector<2x4xf32>
    %cst = arith.constant dense<0.000000e+00> : vector<2xf32>
    %4 = vector.multi_reduction <add>, %3, %cst [1] : vector<2x4xf32> to vector<2xf32>
    %5 = vector.shape_cast %4 : vector<2xf32> to vector<2x1xf32>
    %c0_3 = arith.constant 0 : index
    %c0_4 = arith.constant 0 : index
    %6 = vector.load %arg2[%c0_3, %c0_4] : memref<2x1xf32, #tpu.memory_space<vmem>>, vector<2x1xf32>
    tpu.vector_store %arg2[%c0_3, %c0_4], %5 {strides = array<i32>} : memref<2x1xf32, #tpu.memory_space<vmem>>, vector<2x1xf32>,
    return
  }
}

</mosaic_0001>

<llo_original>
// kernel: tpu_custom_call.1
$region0: #{tpu_custom_call.1}
  #allocation0 [shape = 'u32[]', space=smem, size = 0x4, offset = 0x4, fixed_abs, tag = 'smem constant byte address 0x4 - core index']
  #allocation1 [shape = 'u32[144,128]{1,0:T(1,128)}', space=vmem, size = 0x12000, scoped, tag = 'internal scratch']
  %s0 = inlined_call_operand.hbm [shape: f32[2,4], index: 0, kind: input, shape index: {}]
  %s1 = inlined_call_operand.vmem [shape: f32[1,4], index: 1, kind: input, shape index: {}]
  %s2 = inlined_call_operand.vmem [shape: f32[2,1], index: 2, kind: output, shape index: {}]
  %s3 = sld [smem:[#allocation0]]
  $region22: #{tpu_custom_call.1} parent=0
    _
  %s5 = ssub.s32 1, %s3
  %s6 = scalar_select 0, %s5, %s3
  $region1: #{tpu_custom_call.1} parent=0
    #allocation2 [shape = 'u8[1024]{0}', space=vmem, size = 0x400, scoped, tag = 'input window, operand 0, single buffered']
    #allocation3 [shape = 's32[1]{0}', space=sflag, size = 0x4, scoped, tag = 'scoped memory for tpu_custom_call.1']
    %7 = vsyncpa [#allocation3], 0
    // Predicated region
    $region2: #{tpu_custom_call.1} parent=1 // pred_check
      _
    $region3: #{tpu_custom_call.1} parent=1 // pred_check_branch
      %9 = sbr.rel (0) target = $region5
    $region4: #{tpu_custom_call.1} parent=1 // pred_region
      %s11 = ssub.s32 32, 32
      %12 = vsyncadd [#allocation3], %s11
      %s14 = sshll.u32 [#allocation2], 4
      %s15 = int_to_ptr.vmem [resolvable:$true] %s14
      %17 = dma.hbm_to_vmem [thread:$0]  %s0, 32, %s15, [#allocation3]
    $region5: #{tpu_custom_call.1} parent=1 // pred_fallthru
      _
    // Predicated region
    $region6: #{tpu_custom_call.1} parent=1 // pred_check
      _
    $region7: #{tpu_custom_call.1} parent=1 // pred_check_branch
      %19 = sbr.rel (0) target = $region9
    $region8: #{tpu_custom_call.1} parent=1 // pred_region
      _
    $region9: #{tpu_custom_call.1} parent=1 // pred_fallthru
      _
    // Predicated region
    $region10: #{tpu_custom_call.1} parent=1 // pred_check
      _
    $region11: #{tpu_custom_call.1} parent=1 // pred_check_branch
      %21 = sbr.rel (0) target = $region13
    $region12: #{tpu_custom_call.1} parent=1 // pred_region
      %22 = dma.done [#allocation3], 32
    $region13: #{tpu_custom_call.1} parent=1 // pred_fallthru
      _
    %v23 = vld [vmem:[#allocation2] sm:$0x3]
    %v24 = vld [vmem:[%s1] sm:$0x1]
    %v26 = vlaneseq
    %v27 = vshrl.u32 %v26, 7
    %v28 = vsub.s32 0, %v27
    %v29 = vrot.slane %v24, %v28
    %v31 = vmul.f32 %v23, %v29
    %vm32 = vcmask 25600
    %v33 = vsel %vm32, %v31, 0.0
    %34 = vadd.xlane.f32.xlu0 %v33
    %v35 = vpop.xlane.xlu0 %34
    %vm36 = vcmask 1024
    %37 = vst.msk [vmem:[%s2] sm:$0x3] %vm36, %v35
    // Predicated region
    $region14: #{tpu_custom_call.1} parent=1 // pred_check
      _
    $region15: #{tpu_custom_call.1} parent=1 // pred_check_branch
      %39 = sbr.rel (0) target = $region17
    $region16: #{tpu_custom_call.1} parent=1 // pred_region
      _
    $region17: #{tpu_custom_call.1} parent=1 // pred_fallthru
      _
    // Predicated region
    $region18: #{tpu_custom_call.1} parent=1 // pred_check
      _
    $region19: #{tpu_custom_call.1} parent=1 // pred_check_branch
      %41 = sbr.rel (0) target = $region21
    $region20: #{tpu_custom_call.1} parent=1 // pred_region
      _
    $region21: #{tpu_custom_call.1} parent=1 // pred_fallthru
      _
    %42 = vsyncpa [#allocation3], 1

</llo_original>
